<compile_context>
chip_gen: v5e
topology: v5e:2x2
jax: 0.10.0
libtpu: 0.0.40
codegen_flags: <defaults>
</compile_context>

<pallas_src>
import functools

import jax
import jax.numpy as jnp
from jax.experimental import pallas as pl
from jax.experimental.pallas import tpu as pltpu


def _round_up(x, m):
    return ((x + m - 1) // m) * m


def _base_filter_kernel(x_ref, w_ref, b_ref, o_ref, *, kernel_size, max_len, l_out):
    # x_ref: (b_tile * max_len, vocab)       bf16  one-hot rows, batch-major / channel-last
    # w_ref: (vocab, kernel_size * F_pad)    bf16  tap k occupies lanes [k*F_pad, (k+1)*F_pad)
    # b_ref: (1, F_pad)                      f32
    # o_ref: (b_tile, F_pad)                 f32
    b_tile, f_pad = o_ref.shape
    n_rows = b_tile * max_len

    # All K conv taps in a single MXU matmul, f32 accumulation.
    y = jnp.dot(x_ref[...], w_ref[...], preferred_element_type=jnp.float32)

    # Align tap k with tap 0 via a sublane roll (shift by -k == n_rows - k), then sum.
    # acc[b*L + l] == conv[b, l] for l < l_out; rows with l >= l_out hold wrapped garbage and
    # are masked out before the max (they never cross into a valid position).
    acc = y[:, 0:f_pad]
    for k in range(1, kernel_size):                       # static unroll, kernel_size is small
        tap = y[:, k * f_pad:(k + 1) * f_pad]             # lane-aligned static slice (mult. of 128)
        acc = acc + pltpu.roll(tap, shift=n_rows - k, axis=0)

    acc = acc.reshape(b_tile, max_len, f_pad)
    pos = jax.lax.broadcasted_iota(jnp.int32, (b_tile, max_len, f_pad), 1)
    acc = jnp.where(pos < l_out, acc, -jnp.inf)

    # Global max-pool over valid conv positions; bias AFTER the max (equivalent & cheaper).
    pooled = jnp.max(acc, axis=1) + b_ref[...]
    o_ref[...] = jnp.maximum(pooled, 0.0).astype(o_ref.dtype)


def base_filter_forward(one_hot_ncl, weight, bias, *, kernel_size, b_tile=None):
    """one_hot_ncl: (B, vocab, max_len) NCL like PyTorch Conv1d.
    weight: (nb_filters, vocab, kernel_size), bias: (nb_filters,). Returns (B, nb_filters) f32."""
    B, vocab, max_len = one_hot_ncl.shape
    nb_filters = weight.shape[0]
    l_out = max_len - kernel_size + 1
    if l_out <= 0:
        raise ValueError("max_len must be >= kernel_size for a 'valid' convolution")

    f_pad = _round_up(nb_filters, 128)            # lane-dense output / MXU N axis

    if b_tile is None:
        # ~1024 sublane rows of x per grid step amortizes per-step overhead and stays far under
        # even v7x's 64 MiB VMEM; cap so tiny batches are not over-padded.
        b_tile = min(max(8, _round_up(max(1, 1024 // max_len), 8)), _round_up(B, 8))
    b_pad = _round_up(B, b_tile)

    # ---- glue (plain JAX): layout + dtype prep ------------------------------------------------
    # NCL -> channel-last, pad batch, flatten to 2-D, bf16 (exact for one-hot 0/1 values).
    x = jnp.transpose(one_hot_ncl, (0, 2, 1))                         # (B, L, V)
    x = jnp.pad(x, ((0, b_pad - B), (0, 0), (0, 0)))
    x2d = x.reshape(b_pad * max_len, vocab).astype(jnp.bfloat16)

    # Weight (F, V, K) -> (V, K*F_pad):  w2d[v, k*F_pad + f] = weight[f, v, k]
    w = jnp.transpose(weight, (1, 2, 0))                              # (V, K, F)
    w = jnp.pad(w, ((0, 0), (0, 0), (0, f_pad - nb_filters)))
    w2d = w.reshape(vocab, kernel_size * f_pad).astype(jnp.bfloat16)

    b2d = jnp.pad(bias, (0, f_pad - nb_filters)).reshape(1, f_pad).astype(jnp.float32)

    kernel = functools.partial(_base_filter_kernel, kernel_size=kernel_size,
                               max_len=max_len, l_out=l_out)

    flops = 2 * b_pad * max_len * vocab * kernel_size * f_pad
    bytes_accessed = (b_pad * max_len * vocab * 2          # x (bf16)
                      + vocab * kernel_size * f_pad * 2    # weights (bf16)
                      + f_pad * 4                          # bias
                      + b_pad * f_pad * 4)                 # output

    out_padded = pl.pallas_call(
        kernel,
        out_shape=jax.ShapeDtypeStruct((b_pad, f_pad), jnp.float32),
        grid_spec=pltpu.PrefetchScalarGridSpec(
            num_scalar_prefetch=0,
            grid=(b_pad // b_tile,),
            in_specs=[
                pl.BlockSpec((b_tile * max_len, vocab), lambda i: (i, 0)),
                pl.BlockSpec((vocab, kernel_size * f_pad), lambda i: (0, 0)),
                pl.BlockSpec((1, f_pad), lambda i: (0, 0)),
            ],
            out_specs=pl.BlockSpec((b_tile, f_pad), lambda i: (i, 0)),
        ),
        compiler_params=pltpu.CompilerParams(
            dimension_semantics=("parallel",),
            vmem_limit_bytes=32 * 1024 * 1024,
        ),
        cost_estimate=pl.CostEstimate(flops=flops, transcendentals=0,
                                      bytes_accessed=bytes_accessed),
    )(x2d, w2d, b2d)

    # Drop batch / filter padding.
    return out_padded[:B, :nb_filters]


def _reference_forward(one_hot_ncl, weight, bias, *, kernel_size):
    """Pure-JAX f32 reference mirroring the PyTorch module (conv1d 'valid' -> maxpool -> relu)."""
    B, vocab, max_len = one_hot_ncl.shape
    l_out = max_len - kernel_size + 1
    x = jnp.transpose(one_hot_ncl, (0, 2, 1)).astype(jnp.float32)     # (B, L, V)
    acc = jnp.zeros((B, l_out, weight.shape[0]), jnp.float32)
    for k in range(kernel_size):
        acc += jnp.einsum("blv,vf->blf", x[:, k:k + l_out, :],
                          weight[:, :, k].T.astype(jnp.float32))
    conv = acc + bias[None, None, :]
    return jnp.maximum(jnp.max(conv, axis=1), 0.0)


if __name__ == "__main__":
    B = 2
    vocab_size = 4
    kernel_size = 3
    nb_filters = 32
    max_len = 16

    key = jax.random.PRNGKey(0)
    k_x, k_w = jax.random.split(key)

    # One-hot input, NCL like PyTorch Conv1d expects.
    tokens = jax.random.randint(k_x, (B, max_len), 0, vocab_size)
    one_hot = jax.nn.one_hot(tokens, vocab_size, dtype=jnp.float32)   # (B, L, V)
    one_hot_ncl = jnp.transpose(one_hot, (0, 2, 1))                   # (B, V, L)

    # Deterministic xavier_normal_-style init; zero bias (matches conv1d_xiaver_init).
    fan_in = vocab_size * kernel_size
    fan_out = nb_filters * kernel_size
    std = (2.0 / (fan_in + fan_out)) ** 0.5
    weight = std * jax.random.normal(k_w, (nb_filters, vocab_size, kernel_size), jnp.float32)
    bias = jnp.zeros((nb_filters,), jnp.float32)

    out = base_filter_forward(one_hot_ncl, weight, bias, kernel_size=kernel_size)
    out = jax.block_until_ready(out)

    ref = _reference_forward(one_hot_ncl, weight, bias, kernel_size=kernel_size)
    assert out.shape == (B, nb_filters)
    # Kernel runs the matmul with bf16 weights on the MXU (one-hot activations are exact in
    # bf16); compare against the f32 reference with a correspondingly loose tolerance.
    assert jnp.allclose(out, ref, atol=5e-3, rtol=1e-2), float(jnp.max(jnp.abs(out - ref)))

    print("KERNEL_OK")
</pallas_src>

<mosaic_0001>
module attributes {stable_mosaic.version = 11 : i64} {
  func.func @_base_filter_kernel(%arg0: i32, %arg1: memref<128x4xbf16, #tpu.memory_space<vmem>>, %arg2: memref<4x384xbf16, #tpu.memory_space<vmem>>, %arg3: memref<1x128xf32, #tpu.memory_space<vmem>>, %arg4: memref<8x128xf32, #tpu.memory_space<vmem>>) attributes {dimension_semantics = [#tpu.dimension_semantics<parallel>], iteration_bounds = array<i64: 1>, scalar_prefetch = 0 : i64, scratch_operands = 0 : i64, tpu.core_type = #tpu.core_type<tc>, window_params = [{transform_indices = @transform_0, window_bounds = array<i64: 128, 4>}, {pipeline_mode = #tpu.pipeline_mode<synchronous>, transform_indices = @transform_1, window_bounds = array<i64: 4, 384>}, {pipeline_mode = #tpu.pipeline_mode<synchronous>, transform_indices = @transform_2, window_bounds = array<i64: 1, 128>}, {transform_indices = @transform_3, window_bounds = array<i64: 8, 128>}]} {
    %c0 = arith.constant 0 : index
    %c0_0 = arith.constant 0 : index
    %0 = vector.load %arg1[%c0, %c0_0] : memref<128x4xbf16, #tpu.memory_space<vmem>>, vector<128x4xbf16>
    %c0_1 = arith.constant 0 : index
    %c0_2 = arith.constant 0 : index
    %1 = vector.load %arg2[%c0_1, %c0_2] : memref<4x384xbf16, #tpu.memory_space<vmem>>, vector<4x384xbf16>
    %cst = arith.constant dense<0.000000e+00> : vector<128x384xf32>
    %2 = tpu.matmul %0, %1, %cst {dimension_numbers = #tpu.dot_dimension_numbers<[1], [0], [0], [1], [0, 0, 1, 1], [], []>} : vector<128x4xbf16>, vector<4x384xbf16>, vector<128x384xf32> -> vector<128x384xf32>
    %3 = vector.extract_strided_slice %2 {offsets = [0, 0], sizes = [128, 128], strides = [1, 1]} : vector<128x384xf32> to vector<128x128xf32>
    %4 = vector.extract_strided_slice %2 {offsets = [0, 128], sizes = [128, 128], strides = [1, 1]} : vector<128x384xf32> to vector<128x128xf32>
    %c127_i32 = arith.constant 127 : i32
    %5 = tpu.dynamic_rotate %4 by %c127_i32 dim 0 : vector<128x128xf32>, i32 -> vector<128x128xf32>
    %6 = arith.addf %3, %5 : vector<128x128xf32>
    %7 = vector.extract_strided_slice %2 {offsets = [0, 256], sizes = [128, 128], strides = [1, 1]} : vector<128x384xf32> to vector<128x128xf32>
    %c126_i32 = arith.constant 126 : i32
    %8 = tpu.dynamic_rotate %7 by %c126_i32 dim 0 : vector<128x128xf32>, i32 -> vector<128x128xf32>
    %9 = arith.addf %6, %8 : vector<128x128xf32>
    %10 = vector.shape_cast %9 : vector<128x128xf32> to vector<8x16x128xf32>
    %11 = tpu.iota {dimensions = array<i32: 1>} : vector<8x16x128xi32>
    %c14_i32 = arith.constant 14 : i32
    %12 = vector.broadcast %c14_i32 : i32 to vector<8x16x128xi32>
    %13 = arith.cmpi slt, %11, %12 : vector<8x16x128xi32>
    %cst_3 = arith.constant 0xFF800000 : f32
    %14 = vector.broadcast %cst_3 : f32 to vector<8x16x128xf32>
    %15 = arith.select %13, %10, %14 : vector<8x16x128xi1>, vector<8x16x128xf32>
    %cst_4 = arith.constant dense<0xFF800000> : vector<8x128xf32>
    %16 = vector.multi_reduction <maximumf>, %15, %cst_4 [1] : vector<8x16x128xf32> to vector<8x128xf32>
    %c0_5 = arith.constant 0 : index
    %c0_6 = arith.constant 0 : index
    %17 = vector.load %arg3[%c0_5, %c0_6] : memref<1x128xf32, #tpu.memory_space<vmem>>, vector<1x128xf32>
    %18 = vector.broadcast %17 : vector<1x128xf32> to vector<8x128xf32>
    %19 = arith.addf %16, %18 : vector<8x128xf32>
    %cst_7 = arith.constant 0.000000e+00 : f32
    %20 = vector.broadcast %cst_7 : f32 to vector<8x128xf32>
    %21 = arith.maximumf %19, %20 : vector<8x128xf32>
    %c0_8 = arith.constant 0 : index
    %c0_9 = arith.constant 0 : index
    %22 = vector.load %arg4[%c0_8, %c0_9] : memref<8x128xf32, #tpu.memory_space<vmem>>, vector<8x128xf32>
    tpu.vector_store %arg4[%c0_8, %c0_9], %21 {strides = array<i32>} : memref<8x128xf32, #tpu.memory_space<vmem>>, vector<8x128xf32>,
    return
  }
  func.func @transform_0(%arg0: i32) -> (i32, i32) {
    %c0_i32 = arith.constant 0 : i32
    %c0_i32_0 = arith.constant 0 : i32
    return %arg0, %c0_i32 : i32, i32
  }
  func.func @transform_1(%arg0: i32) -> (i32, i32) {
    %c0_i32 = arith.constant 0 : i32
    %c0_i32_0 = arith.constant 0 : i32
    %c0_i32_1 = arith.constant 0 : i32
    return %c0_i32, %c0_i32_0 : i32, i32
  }
  func.func @transform_2(%arg0: i32) -> (i32, i32) {
    %c0_i32 = arith.constant 0 : i32
    %c0_i32_0 = arith.constant 0 : i32
    %c0_i32_1 = arith.constant 0 : i32
    return %c0_i32, %c0_i32_0 : i32, i32
  }
  func.func @transform_3(%arg0: i32) -> (i32, i32) {
    %c0_i32 = arith.constant 0 : i32
    %c0_i32_0 = arith.constant 0 : i32
    return %arg0, %c0_i32 : i32, i32
  }
}

</mosaic_0001>

<llo_original>
// kernel: tpu_custom_call.1
$region0: #{tpu_custom_call.1}
  #allocation0 [shape = 'u32[]', space=smem, size = 0x4, offset = 0x4, fixed_abs, tag = 'smem constant byte address 0x4 - core index']
  #allocation1 [shape = 'u32[72,128]{1,0:T(1,128)}', space=vmem, size = 0x9000, scoped, tag = 'internal scratch']
  %s0 = inlined_call_operand.vmem [shape: bf16[128,4], index: 0, kind: input, shape index: {}]
  %s1 = inlined_call_operand.vmem [shape: bf16[4,384], index: 1, kind: input, shape index: {}]
  %s2 = inlined_call_operand.vmem [shape: f32[1,128], index: 2, kind: input, shape index: {}]
  %s3 = inlined_call_operand.hbm [shape: f32[8,128], index: 3, kind: output, shape index: {}]
  %s4 = sld [smem:[#allocation0]]
  $region22: #{tpu_custom_call.1} parent=0
    _
  %s6 = ssub.s32 1, %s4
  %s7 = scalar_select 0, %s6, %s4
  $region1: #{tpu_custom_call.1} parent=0
    #allocation2 [shape = 'u8[4096]{0}', space=vmem, size = 0x1000, scoped, tag = 'output window, operand 0, single buffered']
    #allocation3 [shape = 's32[1]{0}', space=sflag, size = 0x4, scoped, tag = 'scoped memory for tpu_custom_call.1']
    %8 = vsyncpa [#allocation3], 0
    // Predicated region
    $region2: #{tpu_custom_call.1} parent=1 // pred_check
      _
    $region3: #{tpu_custom_call.1} parent=1 // pred_check_branch
      %10 = sbr.rel (0) target = $region5
    $region4: #{tpu_custom_call.1} parent=1 // pred_region
      _
    $region5: #{tpu_custom_call.1} parent=1 // pred_fallthru
      _
    // Predicated region
    $region6: #{tpu_custom_call.1} parent=1 // pred_check
      _
    $region7: #{tpu_custom_call.1} parent=1 // pred_check_branch
      %12 = sbr.rel (0) target = $region9
    $region8: #{tpu_custom_call.1} parent=1 // pred_region
      _
    $region9: #{tpu_custom_call.1} parent=1 // pred_fallthru
      _
    // Predicated region
    $region10: #{tpu_custom_call.1} parent=1 // pred_check
      _
    $region11: #{tpu_custom_call.1} parent=1 // pred_check_branch
      %14 = sbr.rel (0) target = $region13
    $region12: #{tpu_custom_call.1} parent=1 // pred_region
      _
    $region13: #{tpu_custom_call.1} parent=1 // pred_fallthru
      _
    %v16 = vld [vmem:[%s0] sm:$0xf]
    %v17 = vld [vmem:[%s0 + $0x4] sm:$0xf]
    %v18 = vld [vmem:[%s0 + $0x8] sm:$0xf]
    %v19 = vld [vmem:[%s0 + $0xc] sm:$0xf]
    %v20 = vld [vmem:[%s0 + $0x10] sm:$0xf]
    %v21 = vld [vmem:[%s0 + $0x14] sm:$0xf]
    %v22 = vld [vmem:[%s0 + $0x18] sm:$0xf]
    %v23 = vld [vmem:[%s0 + $0x1c] sm:$0xf]
    %v24 = vld [vmem:[%s0 + $0x20] sm:$0xf]
    %v25 = vld [vmem:[%s0 + $0x24] sm:$0xf]
    %v26 = vld [vmem:[%s0 + $0x28] sm:$0xf]
    %v27 = vld [vmem:[%s0 + $0x2c] sm:$0xf]
    %v28 = vld [vmem:[%s0 + $0x30] sm:$0xf]
    %v29 = vld [vmem:[%s0 + $0x34] sm:$0xf]
    %v30 = vld [vmem:[%s0 + $0x38] sm:$0xf]
    %v31 = vld [vmem:[%s0 + $0x3c] sm:$0xf]
    %v32 = vld [vmem:[%s1] sm:$0x3f]
    %v49 = vunpack.c.l.b16 %v16
    %v50 = vunpack.c.l.b16 %v17
    %v51 = vunpack.c.l.b16 %v18
    %v52 = vunpack.c.l.b16 %v19
    %v53 = vunpack.c.l.b16 %v20
    %v54 = vunpack.c.l.b16 %v21
    %v55 = vunpack.c.l.b16 %v22
    %v56 = vunpack.c.l.b16 %v23
    %v57 = vunpack.c.l.b16 %v24
    %v58 = vunpack.c.l.b16 %v25
    %v59 = vunpack.c.l.b16 %v26
    %v60 = vunpack.c.l.b16 %v27
    %v61 = vunpack.c.l.b16 %v28
    %v62 = vunpack.c.l.b16 %v29
    %v63 = vunpack.c.l.b16 %v30
    %v64 = vunpack.c.l.b16 %v31
    %v65 = vpack.c.b16 %v50, %v49
    %v66 = vpack.c.b16 %v52, %v51
    %v67 = vpack.c.b16 %v54, %v53
    %v68 = vpack.c.b16 %v56, %v55
    %v69 = vpack.c.b16 %v58, %v57
    %v70 = vpack.c.b16 %v60, %v59
    %v71 = vpack.c.b16 %v62, %v61
    %v72 = vpack.c.b16 %v64, %v63
    %74 = vst [vmem:[#allocation1] ss:$4 sm:$0xff] %v32
    %v75 = vld.sshfl [vmem:[#allocation1] sm:$0xff pattern:$0x73625140]
    %v76 = vld.sshfl [vmem:[#allocation1 + $0x8] sm:$0xff pattern:$0x73625140]
    %v77 = vld.sshfl [vmem:[#allocation1 + $0x10] sm:$0xff pattern:$0x73625140]
    %vm78 = vcmask 31744
    %v80 = vsel %vm78, %v65, 0
    %v83 = vsel %vm78, %v66, 0
    %v86 = vsel %vm78, %v67, 0
    %v89 = vsel %vm78, %v68, 0
    %v92 = vsel %vm78, %v69, 0
    %v95 = vsel %vm78, %v70, 0
    %v98 = vsel %vm78, %v71, 0
    %v101 = vsel %vm78, %v72, 0
    %vm103 = vcmask 1041408
    %v104 = vsel %vm103, %v75, 0
    %v106 = vsel %vm103, %v76, 0
    %v108 = vsel %vm103, %v77, 0
    %110 = vmatpush.bf16.msra.mxu0 0
    %111 = vmatpush.bf16.msra.mxu0 0
    %112 = vmatpush.bf16.msra.mxu0 0
    %113 = vmatpush.bf16.msra.mxu0 0
    %114 = vmatpush.bf16.msra.mxu0 0
    %115 = vmatpush.bf16.msra.mxu0 0
    %116 = vmatpush.bf16.msra.mxu0 0
    %117 = vmatpush.bf16.msra.mxu0 %v104
    %118 = vmatmul.bf16.gmra.mxu0 %v80
    %v119 = vpop.f32.mrf.mxu0
    %v120 = vadd.f32 0.0, %v119
    %v121 = vpop.f32.mrf.mxu0
    %v122 = vadd.f32 0.0, %v121
    %123 = vmatmul.bf16.gmra.mxu0 %v83
    %v124 = vpop.f32.mrf.mxu0
    %v125 = vadd.f32 0.0, %v124
    %v126 = vpop.f32.mrf.mxu0
    %v127 = vadd.f32 0.0, %v126
    %128 = vmatmul.bf16.gmra.mxu0 %v86
    %v129 = vpop.f32.mrf.mxu0
    %v130 = vadd.f32 0.0, %v129
    %v131 = vpop.f32.mrf.mxu0
    %v132 = vadd.f32 0.0, %v131
    %133 = vmatmul.bf16.gmra.mxu0 %v89
    %v134 = vpop.f32.mrf.mxu0
    %v135 = vadd.f32 0.0, %v134
    %v136 = vpop.f32.mrf.mxu0
    %v137 = vadd.f32 0.0, %v136
    %138 = vmatmul.bf16.gmra.mxu0 %v92
    %v139 = vpop.f32.mrf.mxu0
    %v140 = vadd.f32 0.0, %v139
    %v141 = vpop.f32.mrf.mxu0
    %v142 = vadd.f32 0.0, %v141
    %143 = vmatmul.bf16.gmra.mxu0 %v95
    %v144 = vpop.f32.mrf.mxu0
    %v145 = vadd.f32 0.0, %v144
    %v146 = vpop.f32.mrf.mxu0
    %v147 = vadd.f32 0.0, %v146
    %148 = vmatmul.bf16.gmra.mxu0 %v98
    %v149 = vpop.f32.mrf.mxu0
    %v150 = vadd.f32 0.0, %v149
    %v151 = vpop.f32.mrf.mxu0
    %v152 = vadd.f32 0.0, %v151
    %153 = vmatmul.bf16.gmra.mxu0 %v101
    %v154 = vpop.f32.mrf.mxu0
    %v155 = vadd.f32 0.0, %v154
    %v156 = vpop.f32.mrf.mxu0
    %v157 = vadd.f32 0.0, %v156
    %158 = vdwg.mxu0
    %159 = vmatpush.bf16.msra.mxu0 0
    %160 = vmatpush.bf16.msra.mxu0 0
    %161 = vmatpush.bf16.msra.mxu0 0
    %162 = vmatpush.bf16.msra.mxu0 0
    %163 = vmatpush.bf16.msra.mxu0 0
    %164 = vmatpush.bf16.msra.mxu0 0
    %165 = vmatpush.bf16.msra.mxu0 0
    %166 = vmatpush.bf16.msra.mxu0 %v106
    %167 = vmatmul.bf16.gmra.mxu0 %v80
    %v168 = vpop.f32.mrf.mxu0
    %v169 = vadd.f32 0.0, %v168
    %v170 = vpop.f32.mrf.mxu0
    %v171 = vadd.f32 0.0, %v170
    %172 = vmatmul.bf16.gmra.mxu0 %v83
    %v173 = vpop.f32.mrf.mxu0
    %v174 = vadd.f32 0.0, %v173
    %v175 = vpop.f32.mrf.mxu0
    %v176 = vadd.f32 0.0, %v175
    %177 = vmatmul.bf16.gmra.mxu0 %v86
    %v178 = vpop.f32.mrf.mxu0
    %v179 = vadd.f32 0.0, %v178
    %v180 = vpop.f32.mrf.mxu0
    %v181 = vadd.f32 0.0, %v180
    %182 = vmatmul.bf16.gmra.mxu0 %v89
    %v183 = vpop.f32.mrf.mxu0
    %v184 = vadd.f32 0.0, %v183
    %v185 = vpop.f32.mrf.mxu0
    %v186 = vadd.f32 0.0, %v185
    %187 = vmatmul.bf16.gmra.mxu0 %v92
    %v188 = vpop.f32.mrf.mxu0
    %v189 = vadd.f32 0.0, %v188
    %v190 = vpop.f32.mrf.mxu0
    %v191 = vadd.f32 0.0, %v190
    %192 = vmatmul.bf16.gmra.mxu0 %v95
    %v193 = vpop.f32.mrf.mxu0
    %v194 = vadd.f32 0.0, %v193
    %v195 = vpop.f32.mrf.mxu0
    %v196 = vadd.f32 0.0, %v195
    %197 = vmatmul.bf16.gmra.mxu0 %v98
    %v198 = vpop.f32.mrf.mxu0
    %v199 = vadd.f32 0.0, %v198
    %v200 = vpop.f32.mrf.mxu0
    %v201 = vadd.f32 0.0, %v200
    %202 = vmatmul.bf16.gmra.mxu0 %v101
    %v203 = vpop.f32.mrf.mxu0
    %v204 = vadd.f32 0.0, %v203
    %v205 = vpop.f32.mrf.mxu0
    %v206 = vadd.f32 0.0, %v205
    %207 = vdwg.mxu0
    %208 = vmatpush.bf16.msra.mxu0 0
    %209 = vmatpush.bf16.msra.mxu0 0
    %210 = vmatpush.bf16.msra.mxu0 0
    %211 = vmatpush.bf16.msra.mxu0 0
    %212 = vmatpush.bf16.msra.mxu0 0
    %213 = vmatpush.bf16.msra.mxu0 0
    %214 = vmatpush.bf16.msra.mxu0 0
    %215 = vmatpush.bf16.msra.mxu0 %v108
    %216 = vmatmul.bf16.gmra.mxu0 %v80
    %v217 = vpop.f32.mrf.mxu0
    %v218 = vadd.f32 0.0, %v217
    %v219 = vpop.f32.mrf.mxu0
    %v220 = vadd.f32 0.0, %v219
    %221 = vmatmul.bf16.gmra.mxu0 %v83
    %v222 = vpop.f32.mrf.mxu0
    %v223 = vadd.f32 0.0, %v222
    %v224 = vpop.f32.mrf.mxu0
    %v225 = vadd.f32 0.0, %v224
    %226 = vmatmul.bf16.gmra.mxu0 %v86
    %v227 = vpop.f32.mrf.mxu0
    %v228 = vadd.f32 0.0, %v227
    %v229 = vpop.f32.mrf.mxu0
    %v230 = vadd.f32 0.0, %v229
    %231 = vmatmul.bf16.gmra.mxu0 %v89
    %v232 = vpop.f32.mrf.mxu0
    %v233 = vadd.f32 0.0, %v232
    %v234 = vpop.f32.mrf.mxu0
    %v235 = vadd.f32 0.0, %v234
    %236 = vmatmul.bf16.gmra.mxu0 %v92
    %v237 = vpop.f32.mrf.mxu0
    %v238 = vadd.f32 0.0, %v237
    %v239 = vpop.f32.mrf.mxu0
    %v240 = vadd.f32 0.0, %v239
    %241 = vmatmul.bf16.gmra.mxu0 %v95
    %v242 = vpop.f32.mrf.mxu0
    %v243 = vadd.f32 0.0, %v242
    %v244 = vpop.f32.mrf.mxu0
    %v245 = vadd.f32 0.0, %v244
    %246 = vmatmul.bf16.gmra.mxu0 %v98
    %v247 = vpop.f32.mrf.mxu0
    %v248 = vadd.f32 0.0, %v247
    %v249 = vpop.f32.mrf.mxu0
    %v250 = vadd.f32 0.0, %v249
    %251 = vmatmul.bf16.gmra.mxu0 %v101
    %v252 = vpop.f32.mrf.mxu0
    %v253 = vadd.f32 0.0, %v252
    %v254 = vpop.f32.mrf.mxu0
    %v255 = vadd.f32 0.0, %v254
    %256 = vdwg.mxu0
    %v257 = vrot.slane %v169, 1
    %v258 = vrot.slane %v171, 1
    %v259 = vrot.slane %v174, 1
    %v260 = vrot.slane %v176, 1
    %v261 = vrot.slane %v179, 1
    %v262 = vrot.slane %v181, 1
    %v263 = vrot.slane %v184, 1
    %v264 = vrot.slane %v186, 1
    %v265 = vrot.slane %v189, 1
    %v266 = vrot.slane %v191, 1
    %v267 = vrot.slane %v194, 1
    %v268 = vrot.slane %v196, 1
    %v269 = vrot.slane %v199, 1
    %v270 = vrot.slane %v201, 1
    %v271 = vrot.slane %v204, 1
    %v272 = vrot.slane %v206, 1
    %v273 = vlaneseq
    %v274 = vshrl.u32 %v273, 7
    %vm275 = vcmp.lt.s32.totalorder %v274, 7
    %v276 = vsel %vm275, %v271, %v272
    %v277 = vsel %vm275, %v270, %v271
    %v278 = vsel %vm275, %v269, %v270
    %v279 = vsel %vm275, %v268, %v269
    %v280 = vsel %vm275, %v267, %v268
    %v281 = vsel %vm275, %v266, %v267
    %v282 = vsel %vm275, %v265, %v266
    %v283 = vsel %vm275, %v264, %v265
    %v284 = vsel %vm275, %v263, %v264
    %v285 = vsel %vm275, %v262, %v263
    %v286 = vsel %vm275, %v261, %v262
    %v287 = vsel %vm275, %v260, %v261
    %v288 = vsel %vm275, %v259, %v260
    %v289 = vsel %vm275, %v258, %v259
    %v290 = vsel %vm275, %v257, %v258
    %v291 = vsel %vm275, %v272, %v257
    %v292 = vadd.f32 %v120, %v290
    %v293 = vadd.f32 %v122, %v289
    %v294 = vadd.f32 %v125, %v288
    %v295 = vadd.f32 %v127, %v287
    %v296 = vadd.f32 %v130, %v286
    %v297 = vadd.f32 %v132, %v285
    %v298 = vadd.f32 %v135, %v284
    %v299 = vadd.f32 %v137, %v283
    %v300 = vadd.f32 %v140, %v282
    %v301 = vadd.f32 %v142, %v281
    %v302 = vadd.f32 %v145, %v280
    %v303 = vadd.f32 %v147, %v279
    %v304 = vadd.f32 %v150, %v278
    %v305 = vadd.f32 %v152, %v277
    %v306 = vadd.f32 %v155, %v276
    %v307 = vadd.f32 %v157, %v291
    %v308 = vrot.slane %v218, 2
    %v309 = vrot.slane %v220, 2
    %v310 = vrot.slane %v223, 2
    %v311 = vrot.slane %v225, 2
    %v312 = vrot.slane %v228, 2
    %v313 = vrot.slane %v230, 2
    %v314 = vrot.slane %v233, 2
    %v315 = vrot.slane %v235, 2
    %v316 = vrot.slane %v238, 2
    %v317 = vrot.slane %v240, 2
    %v318 = vrot.slane %v243, 2
    %v319 = vrot.slane %v245, 2
    %v320 = vrot.slane %v248, 2
    %v321 = vrot.slane %v250, 2
    %v322 = vrot.slane %v253, 2
    %v323 = vrot.slane %v255, 2
    %vm324 = vcmp.lt.s32.totalorder %v274, 6
    %v325 = vsel %vm324, %v322, %v323
    %v326 = vsel %vm324, %v321, %v322
    %v327 = vsel %vm324, %v320, %v321
    %v328 = vsel %vm324, %v319, %v320
    %v329 = vsel %vm324, %v318, %v319
    %v330 = vsel %vm324, %v317, %v318
    %v331 = vsel %vm324, %v316, %v317
    %v332 = vsel %vm324, %v315, %v316
    %v333 = vsel %vm324, %v314, %v315
    %v334 = vsel %vm324, %v313, %v314
    %v335 = vsel %vm324, %v312, %v313
    %v336 = vsel %vm324, %v311, %v312
    %v337 = vsel %vm324, %v310, %v311
    %v338 = vsel %vm324, %v309, %v310
    %v339 = vsel %vm324, %v308, %v309
    %v340 = vsel %vm324, %v323, %v308
    %v341 = vadd.f32 %v292, %v339
    %v342 = vadd.f32 %v293, %v338
    %v343 = vadd.f32 %v294, %v337
    %v344 = vadd.f32 %v295, %v336
    %v345 = vadd.f32 %v296, %v335
    %v346 = vadd.f32 %v297, %v334
    %v347 = vadd.f32 %v298, %v333
    %v348 = vadd.f32 %v299, %v332
    %v349 = vadd.f32 %v300, %v331
    %v350 = vadd.f32 %v301, %v330
    %v351 = vadd.f32 %v302, %v329
    %v352 = vadd.f32 %v303, %v328
    %v353 = vadd.f32 %v304, %v327
    %v354 = vadd.f32 %v305, %v326
    %v355 = vadd.f32 %v306, %v325
    %v356 = vadd.f32 %v307, %v340
    %v357 = vadd.s32 %v274, 8
    %vm358 = vcmp.lt.s32.totalorder %v274, 14
    %vm359 = vcmp.lt.s32.totalorder %v357, 14
    %v360 = vsel %vm358, %v341, -inf
    %v361 = vsel %vm359, %v342, -inf
    %v362 = vsel %vm358, %v343, -inf
    %v363 = vsel %vm359, %v344, -inf
    %v364 = vsel %vm358, %v345, -inf
    %v365 = vsel %vm359, %v346, -inf
    %v366 = vsel %vm358, %v347, -inf
    %v367 = vsel %vm359, %v348, -inf
    %v368 = vsel %vm358, %v349, -inf
    %v369 = vsel %vm359, %v350, -inf
    %v370 = vsel %vm358, %v351, -inf
    %v371 = vsel %vm359, %v352, -inf
    %v372 = vsel %vm358, %v353, -inf
    %v373 = vsel %vm359, %v354, -inf
    %v374 = vsel %vm358, %v355, -inf
    %v375 = vsel %vm359, %v356, -inf
    %v376 = vmax.f32 %v360, %v361
    %v377 = vrot.slane %v376, 4
    %v378 = vmax.f32 %v376, %v377
    %v379 = vrot.slane %v378, 2
    %v380 = vmax.f32 %v378, %v379
    %v381 = vrot.slane %v380, 1
    %v382 = vmax.f32 %v380, %v381
    %v383 = vmax.f32 %v362, %v363
    %v384 = vrot.slane %v383, 4
    %v385 = vmax.f32 %v383, %v384
    %v386 = vrot.slane %v385, 2
    %v387 = vmax.f32 %v385, %v386
    %v388 = vrot.slane %v387, 1
    %v389 = vmax.f32 %v387, %v388
    %v390 = vmax.f32 %v364, %v365
    %v391 = vrot.slane %v390, 4
    %v392 = vmax.f32 %v390, %v391
    %v393 = vrot.slane %v392, 2
    %v394 = vmax.f32 %v392, %v393
    %v395 = vrot.slane %v394, 1
    %v396 = vmax.f32 %v394, %v395
    %v397 = vmax.f32 %v366, %v367
    %v398 = vrot.slane %v397, 4
    %v399 = vmax.f32 %v397, %v398
    %v400 = vrot.slane %v399, 2
    %v401 = vmax.f32 %v399, %v400
    %v402 = vrot.slane %v401, 1
    %v403 = vmax.f32 %v401, %v402
    %v404 = vmax.f32 %v368, %v369
    %v405 = vrot.slane %v404, 4
    %v406 = vmax.f32 %v404, %v405
    %v407 = vrot.slane %v406, 2
    %v408 = vmax.f32 %v406, %v407
    %v409 = vrot.slane %v408, 1
    %v410 = vmax.f32 %v408, %v409
    %v411 = vmax.f32 %v370, %v371
    %v412 = vrot.slane %v411, 4
    %v413 = vmax.f32 %v411, %v412
    %v414 = vrot.slane %v413, 2
    %v415 = vmax.f32 %v413, %v414
    %v416 = vrot.slane %v415, 1
    %v417 = vmax.f32 %v415, %v416
    %v418 = vmax.f32 %v372, %v373
    %v419 = vrot.slane %v418, 4
    %v420 = vmax.f32 %v418, %v419
    %v421 = vrot.slane %v420, 2
    %v422 = vmax.f32 %v420, %v421
    %v423 = vrot.slane %v422, 1
    %v424 = vmax.f32 %v422, %v423
    %v425 = vmax.f32 %v374, %v375
    %v426 = vrot.slane %v425, 4
    %v427 = vmax.f32 %v425, %v426
    %v428 = vrot.slane %v427, 2
    %v429 = vmax.f32 %v427, %v428
    %v430 = vrot.slane %v429, 1
    %v431 = vmax.f32 %v429, %v430
    %v432 = vld [vmem:[%s2] sm:$0x1]
    %v434 = vperm.slane %v432, 0
    %v436 = vadd.f32 %v382, %v434
    %v437 = vadd.f32 %v389, %v434
    %v438 = vadd.f32 %v396, %v434
    %v439 = vadd.f32 %v403, %v434
    %v440 = vadd.f32 %v410, %v434
    %v441 = vadd.f32 %v417, %v434
    %v442 = vadd.f32 %v424, %v434
    %v443 = vadd.f32 %v431, %v434
    %v444 = vmax.f32 %v436, 0.0
    %v445 = vmax.f32 %v437, 0.0
    %v446 = vmax.f32 %v438, 0.0
    %v447 = vmax.f32 %v439, 0.0
    %v448 = vmax.f32 %v440, 0.0
    %v449 = vmax.f32 %v441, 0.0
    %v450 = vmax.f32 %v442, 0.0
    %v451 = vmax.f32 %v443, 0.0
    %v460 = vrot.slane %v445, 7
    %vm461 = vcmask 1041409
    %v462 = vsel %vm461, %v460, %v444
    %v463 = vrot.slane %v446, 6
    %vm464 = vcmask 1042434
    %v465 = vsel %vm464, %v463, %v462
    %v466 = vrot.slane %v447, 5
    %vm467 = vcmask 1043459
    %v468 = vsel %vm467, %v466, %v465
    %v469 = vrot.slane %v448, 4
    %vm470 = vcmask 1044484
    %v471 = vsel %vm470, %v469, %v468
    %v472 = vrot.slane %v449, 3
    %vm473 = vcmask 1045509
    %v474 = vsel %vm473, %v472, %v471
    %v475 = vrot.slane %v450, 2
    %vm476 = vcmask 1046534
    %v477 = vsel %vm476, %v475, %v474
    %v478 = vrot.slane %v451, 1
    %vm479 = vcmask 1047559
    %v480 = vsel %vm479, %v478, %v477
    %482 = vst [vmem:[#allocation2] sm:$0xff] %v480
    // Predicated region
    $region14: #{tpu_custom_call.1} parent=1 // pred_check
      _
    $region15: #{tpu_custom_call.1} parent=1 // pred_check_branch
      %484 = sbr.rel (0) target = $region17
    $region16: #{tpu_custom_call.1} parent=1 // pred_region
      %486 = vsyncadd [#allocation3], 0
      %s488 = sshll.u32 [#allocation2], 4
      %s489 = int_to_ptr.vmem [resolvable:$true] %s488
      %s490 = sshll.u32 %s3, 4
      %s491 = int_to_ptr.hbm [resolvable:$true] %s490
      %493 = dma.vmem_to_hbm [thread:$0]  %s489, 128, %s491, [#allocation3]
    $region17: #{tpu_custom_call.1} parent=1 // pred_fallthru
      _
    // Predicated region
    $region18: #{tpu_custom_call.1} parent=1 // pred_check
      _
    $region19: #{tpu_custom_call.1} parent=1 // pred_check_branch
      %495 = sbr.rel (0) target = $region21
    $region20: #{tpu_custom_call.1} parent=1 // pred_region
      %497 = dma.done [#allocation3], 128
    $region21: #{tpu_custom_call.1} parent=1 // pred_fallthru
      _
    %498 = vsyncpa [#allocation3], 1

</llo_original>
